<compile_context>
chip_gen: v7x
topology: tpu7x:2x2x1
jax: 0.10.0
libtpu: 0.0.40
codegen_flags: <defaults>
</compile_context>

<pallas_src>
import functools

import jax
import jax.numpy as jnp
import numpy as np
from jax import lax
from jax.experimental import pallas as pl
from jax.experimental.pallas import tpu as pltpu

EPS = 1e-5  # nn.InstanceNorm2d default


# ----------------------------------------------------------------------------
# pltpu.roll shift-convention probe
# ----------------------------------------------------------------------------
_ROLL_IS_NUMPY = None


def _roll_is_numpy_convention():
    """True if pltpu.roll follows np.roll semantics: out[i] = x[(i - shift) % n].

    Resolved once with a tiny probe kernel so the halo shifts below stay
    correct regardless of the rotate-direction convention of the installed
    jax / Mosaic version.
    """
    global _ROLL_IS_NUMPY
    if _ROLL_IS_NUMPY is None:
        def probe(x_ref, o_ref):
            o_ref[...] = pltpu.roll(x_ref[...], 1, 1)

        xin = jnp.tile(jnp.arange(128, dtype=jnp.float32), (8, 1))
        out = pl.pallas_call(
            probe, out_shape=jax.ShapeDtypeStruct((8, 128), jnp.float32))(xin)
        _ROLL_IS_NUMPY = bool(np.asarray(out)[0, 0] == 127.0)
    return _ROLL_IS_NUMPY


# ----------------------------------------------------------------------------
# kernel
# ----------------------------------------------------------------------------
def _resnet_block_kernel(x_ref, rc_ref, w1_ref, b1_ref, w2_ref, b2_ref,
                         qp_ref, o_ref, *, H, W, numpy_roll):
    B, C, HW = x_ref.shape

    # Reflection-boundary masks, built once at the 2-D working shape (C, HW)
    # from host-precomputed (col, row) index tables (no int div/mod in-kernel).
    col = jnp.broadcast_to(rc_ref[0:1, :], (C, HW))
    row = jnp.broadcast_to(rc_ref[1:2, :], (C, HW))
    col_first, col_last = col == 0, col == W - 1
    row_first, row_last = row == 0, row == H - 1

    def nbr(a, k):
        # Value at flat spatial index (p + k) mod HW: a lane rotation (XLU).
        shift = (-k) % HW if numpy_roll else k % HW
        return pltpu.roll(a, shift, 1)

    def conv3x3(inp, wr, br):
        """Reflection-padded 3x3 conv on one sample, channels-first flat.

        inp: (C, HW) value.  wr: (9*C, C, 1) ref, rows ordered (kh, kw, ci)
        row-major, each row holding the (C_out, 1) weight column.  br: (C, 1).
        Channel count is tiny, so the MXU would be ~0.1% utilized -- channel
        mixing is done with 9*C broadcast multiply-adds on the VPU instead.
        """
        ip, im = nbr(inp, 1), nbr(inp, -1)            # (h, w+1) / (h, w-1)
        # horizontal taps (kw = 0, 1, 2  <->  dx = -1, 0, +1), reflected edges
        s_by_kw = (jnp.where(col_first, ip, im),      # x[h, reflect(w-1)]
                   inp,                               # x[h, w]
                   jnp.where(col_last, im, ip))       # x[h, reflect(w+1)]
        acc = jnp.zeros((C, HW), jnp.float32)
        for kw, s in enumerate(s_by_kw):
            sp, sm = nbr(s, W), nbr(s, -W)            # row below / row above
            # vertical taps (kh = 0, 1, 2  <->  dy = -1, 0, +1)
            t_by_kh = (jnp.where(row_first, sp, sm),  # reflect(h-1)
                       s,                             # h
                       jnp.where(row_last, sm, sp))   # reflect(h+1)
            for kh, tap in enumerate(t_by_kh):
                base = (kh * 3 + kw) * C
                for ci in range(C):
                    # (C_out, 1) weight column x (1, HW) tap row -> (C, HW)
                    acc = acc + wr[base + ci] * tap[ci:ci + 1, :]
        return acc + br[...]                          # conv bias, (C, 1)

    inv_hw = 1.0 / HW

    def instance_norm(y):
        # InstanceNorm2d(affine=False, eps=1e-5), fused single pass:
        # sum and sum-of-squares together; rsqrt goes to the EUP slot.
        s1 = jnp.sum(y, axis=1, keepdims=True)
        s2 = jnp.sum(y * y, axis=1, keepdims=True)
        mean = s1 * inv_hw
        var = jnp.maximum(s2 * inv_hw - mean * mean, 0.0)
        return (y - mean) * lax.rsqrt(var + EPS)

    # Whole batch handled inside this one invocation (unrolled; B is small).
    for b in range(B):
        xb = x_ref[b]                                 # (C, HW)
        # conv_block: ReflectionPad2d(1) + Conv2d(dim, dim, 3)
        y = conv3x3(xb, w1_ref, b1_ref)
        # * qp (per-sample scalar; kept for exact parity with the PyTorch
        #       forward even though InstanceNorm cancels it for qp > 0)
        y = y * qp_ref[b]
        # activation(norm_layer(.)) = ReLU(InstanceNorm2d(.))
        y = jnp.maximum(instance_norm(y), 0.0)
        # conv_block2: ReflectionPad2d(1) + Conv2d(dim, dim, 3) + InstanceNorm2d
        y = instance_norm(conv3x3(y, w2_ref, b2_ref))
        # residual connection
        o_ref[b] = (xb + y).astype(o_ref.dtype)


# ----------------------------------------------------------------------------
# wrapper
# ----------------------------------------------------------------------------
def resnet_block(x, qp, w1, b1, w2, b2):
    """DCNGAN ResnetBlock forward.

    x : (B, C, H, W) float32 (NCHW, as in PyTorch)
    qp: (B,) per-sample scalar
    w1, w2: (C, C, 3, 3) OIHW conv weights;  b1, b2: (C,) conv biases
    """
    B, C, H, W = x.shape
    HW = H * W

    # ---- wrapper-side layout plumbing (plain XLA, outside the kernel) ----
    # Channels-first *flat* (B, C, H*W): the lane axis is spatial (lane-dense)
    # instead of the tiny channel axis, so kernel loads/stores are unmasked.
    x_flat = x.reshape(B, C, HW).astype(jnp.float32)

    def prep_w(w):  # OIHW -> (9*C_in, C_out, 1), rows ordered (kh, kw, ci)
        return jnp.transpose(w, (2, 3, 1, 0)).reshape(9 * C, C, 1).astype(jnp.float32)

    def prep_b(bvec):
        return bvec.reshape(C, 1).astype(jnp.float32)

    qpk = jnp.broadcast_to(qp.reshape(B, 1, 1).astype(jnp.float32), (B, C, 1))

    # Flat spatial index -> (col, row) lookup, precomputed on the host.
    cols = np.tile(np.arange(W, dtype=np.int32), H)
    rows = np.repeat(np.arange(H, dtype=np.int32), W)
    rc = jnp.asarray(np.stack([cols, rows], axis=0))          # (2, HW) int32

    kernel = functools.partial(_resnet_block_kernel, H=H, W=W,
                               numpy_roll=_roll_is_numpy_convention())

    # Single grid-less invocation: every operand is one VMEM-resident block
    # (a few KB total here), so there is no pipeline startup/teardown and the
    # output store is one lane-dense (..., H*W) block.
    out_flat = pl.pallas_call(
        kernel,
        out_shape=jax.ShapeDtypeStruct((B, C, HW), jnp.float32),
    )(x_flat, rc, prep_w(w1), prep_b(b1), prep_w(w2), prep_b(b2), qpk)

    return out_flat.reshape(B, C, H, W).astype(x.dtype)


# ----------------------------------------------------------------------------
# pure-JAX reference (semantics check)
# ----------------------------------------------------------------------------
def resnet_block_ref(x, qp, w1, b1, w2, b2):
    def rpad(z):
        return jnp.pad(z, ((0, 0), (0, 0), (1, 1), (1, 1)), mode="reflect")

    def conv(z, w, b):
        y = lax.conv_general_dilated(
            z, w, (1, 1), "VALID",
            dimension_numbers=("NCHW", "OIHW", "NCHW"))
        return y + b[None, :, None, None]

    def inorm(z):
        m = jnp.mean(z, axis=(2, 3), keepdims=True)
        v = jnp.mean((z - m) ** 2, axis=(2, 3), keepdims=True)
        return (z - m) * lax.rsqrt(v + EPS)

    y = conv(rpad(x), w1, b1)
    y = y * qp[:, None, None, None]
    y = jax.nn.relu(inorm(y))
    y = inorm(conv(rpad(y), w2, b2))
    return x + y


# ----------------------------------------------------------------------------
# main
# ----------------------------------------------------------------------------
if __name__ == "__main__":
    B, C, H, W = 2, 4, 16, 16          # dim = 4
    key = jax.random.PRNGKey(0)
    kx, kq, k1, k2, k3, k4 = jax.random.split(key, 6)

    x = jax.random.normal(kx, (B, C, H, W), dtype=jnp.float32)
    qp = jax.random.uniform(kq, (B,), dtype=jnp.float32, minval=0.5, maxval=1.5)

    # Deterministic synthetic parameters: Conv2d(dim, dim, 3) twice (OIHW).
    w1 = 0.1 * jax.random.normal(k1, (C, C, 3, 3), dtype=jnp.float32)
    b1 = 0.1 * jax.random.normal(k2, (C,), dtype=jnp.float32)
    w2 = 0.1 * jax.random.normal(k3, (C, C, 3, 3), dtype=jnp.float32)
    b2 = 0.1 * jax.random.normal(k4, (C,), dtype=jnp.float32)

    out = resnet_block(x, qp, w1, b1, w2, b2)
    out = jax.block_until_ready(out)

    ref = resnet_block_ref(x, qp, w1, b1, w2, b2)
    np.testing.assert_allclose(np.asarray(out), np.asarray(ref),
                               rtol=2e-4, atol=2e-4)

    print("KERNEL_OK")
</pallas_src>

<mosaic_0001>
module attributes {stable_mosaic.version = 11 : i64} {
  func.func @probe(%arg0: memref<8x128xf32, #tpu.memory_space<vmem>>, %arg1: memref<8x128xf32, #tpu.memory_space<vmem>>) attributes {dimension_semantics = [], scalar_prefetch = 0 : i64, scratch_operands = 0 : i64, tpu.core_type = #tpu.core_type<tc>} {
    %c0 = arith.constant 0 : index
    %c0_0 = arith.constant 0 : index
    %0 = vector.load %arg0[%c0, %c0_0] : memref<8x128xf32, #tpu.memory_space<vmem>>, vector<8x128xf32>
    %c1_i32 = arith.constant 1 : i32
    %1 = tpu.dynamic_rotate %0 by %c1_i32 dim 1 : vector<8x128xf32>, i32 -> vector<8x128xf32>
    %c0_1 = arith.constant 0 : index
    %c0_2 = arith.constant 0 : index
    %2 = vector.load %arg1[%c0_1, %c0_2] : memref<8x128xf32, #tpu.memory_space<vmem>>, vector<8x128xf32>
    tpu.vector_store %arg1[%c0_1, %c0_2], %1 {strides = array<i32>} : memref<8x128xf32, #tpu.memory_space<vmem>>, vector<8x128xf32>,
    return
  }
}

</mosaic_0001>

<llo_original>
// kernel: tpu_custom_call.1
$region0: #{tpu_custom_call.1}
  #allocation0 [shape = 'u32[]', space=smem, size = 0x4, offset = 0x4, fixed_abs, tag = 'smem constant byte address 0x4 - core index']
  #allocation1 [shape = 'u32[144,128]{1,0:T(1,128)}', space=vmem, size = 0x12000, scoped, tag = 'internal scratch']
  %s0 = inlined_call_operand.hbm [shape: f32[8,128], index: 0, kind: input, shape index: {}]
  %s1 = inlined_call_operand.hbm [shape: f32[8,128], index: 1, kind: output, shape index: {}]
  %s2 = sld [smem:[#allocation0]]
  $region18: #{tpu_custom_call.1} parent=0
    _
  %s4 = ssub.s32 1, %s2
  %s5 = scalar_select 0, %s4, %s2
  $region1: #{tpu_custom_call.1} parent=0
    #allocation2 [shape = 'u8[4096]{0}', space=vmem, size = 0x1000, scoped, tag = 'input window, operand 0, single buffered']
    #allocation3 [shape = 's32[1]{0}', space=sflag, size = 0x4, scoped, tag = 'scoped memory for tpu_custom_call.1']
    #allocation4 [shape = 's32[1]{0}', space=sflag, size = 0x4, scoped, tag = 'scoped memory for tpu_custom_call.1']
    #allocation5 [shape = 'u8[4096]{0}', space=vmem, size = 0x1000, scoped, tag = 'output window, operand 0, single buffered']
    %6 = vsyncpa [#allocation3], 0
    %7 = vsyncpa [#allocation4], 0
    // Predicated region
    $region2: #{tpu_custom_call.1} parent=1 // pred_check
      _
    $region3: #{tpu_custom_call.1} parent=1 // pred_check_branch
      %9 = sbr.rel (0) target = $region5
    $region4: #{tpu_custom_call.1} parent=1 // pred_region
      %s11 = ssub.s32 128, 128
      %12 = vsyncadd [#allocation3], %s11
      %s14 = sshll.u32 [#allocation2], 4
      %s15 = int_to_ptr.vmem [resolvable:$true] %s14
      %17 = dma.hbm_to_vmem [thread:$0]  %s0, 128, %s15, [#allocation3]
    $region5: #{tpu_custom_call.1} parent=1 // pred_fallthru
      _
    // Predicated region
    $region6: #{tpu_custom_call.1} parent=1 // pred_check
      _
    $region7: #{tpu_custom_call.1} parent=1 // pred_check_branch
      %19 = sbr.rel (0) target = $region9
    $region8: #{tpu_custom_call.1} parent=1 // pred_region
      %20 = dma.done [#allocation3], 128
    $region9: #{tpu_custom_call.1} parent=1 // pred_fallthru
      _
    %v21 = vld [vmem:[#allocation2] sm:$0xff]
    %22 = vrot.lane.b32.xlu0 %v21, 1
    %v23 = vpop.permute.xlu0 %22
    %24 = vst [vmem:[#allocation5] sm:$0xff] %v23
    // Predicated region
    $region10: #{tpu_custom_call.1} parent=1 // pred_check
      _
    $region11: #{tpu_custom_call.1} parent=1 // pred_check_branch
      %26 = sbr.rel (0) target = $region13
    $region12: #{tpu_custom_call.1} parent=1 // pred_region
      %s28 = ssub.s32 128, 128
      %29 = vsyncadd [#allocation4], %s28
      %s31 = sshll.u32 [#allocation5], 4
      %s32 = int_to_ptr.vmem [resolvable:$true] %s31
      %34 = dma.vmem_to_hbm [thread:$0]  %s32, 128, %s1, [#allocation4]
    $region13: #{tpu_custom_call.1} parent=1 // pred_fallthru
      _
    // Predicated region
    $region14: #{tpu_custom_call.1} parent=1 // pred_check
      _
    $region15: #{tpu_custom_call.1} parent=1 // pred_check_branch
      %36 = sbr.rel (0) target = $region17
    $region16: #{tpu_custom_call.1} parent=1 // pred_region
      %37 = dma.done [#allocation4], 128
    $region17: #{tpu_custom_call.1} parent=1 // pred_fallthru
      _
    %38 = vsyncpa [#allocation3], 1
    %39 = vsyncpa [#allocation4], 1

</llo_original>
